<compile_context>
chip_gen: v5e
topology: v5e:2x2
jax: 0.10.0
libtpu: 0.0.40
codegen_flags: <defaults>
</compile_context>

<pallas_src>
import math
from functools import partial

import jax
import jax.numpy as jnp
from jax.experimental import pallas as pl
from jax.experimental.pallas import tpu as pltpu


def self_attention_kernel(x_ref, w_ref, b_ref, o_ref):
    x = x_ref[...]                                        # [TB, T, D] (input dtype)
    w = w_ref[...]                                        # [T, D]     f32 params
    b = b_ref[...]                                        # [1, T]     f32 params

    # Pre-activation on a 2-D [TB, T] array: lane reduce over D, f32 accumulate.
    pre = jnp.sum(x * w[None, :, :], axis=-1)             # [TB, T]
    score = jnp.tanh(pre + b)                             # [TB, T]  (EUP tanh, 2-D)

    # out[b, d] = sum_t score[b, t] * x[b, t, d]  -- sublane reduce over T.
    out = jnp.sum(score[:, :, None] * x, axis=1)          # [TB, D]  f32
    # TODO(synk): pack the (TB, D=32) store into a lane-dense (TB*D//128, 128)
    # slab once the required in-kernel (TB,32)->(TB/4,128) relayout is verified
    # to lower in Mosaic; store traffic is only 1/T of the x load traffic here.
    o_ref[...] = out.astype(o_ref.dtype)


def _pick_block_b(batch, seq_len, hidden, budget_bytes=12 * 1024 * 1024):
    """Largest batch-block whose f32 working set (~6 block-sized arrays:
    2x double-buffered x blocks + x*w and score*x products + slack) fits the
    budget.  12 MiB keeps us under the scoped-VMEM defaults on v5e (16 MiB)
    and v6e/v7x (32 MiB) and far under v7x's 64 MiB physical VMEM."""
    row_bytes = max(seq_len * hidden * 4, 1)
    tb = budget_bytes // (6 * row_bytes)
    tb = max(8, min(int(tb), 1024))
    tb = (tb // 8) * 8
    return batch if tb >= batch else tb


@partial(jax.jit, static_argnames=("block_b",))
def self_attention_forward(x, atten_w, atten_bias, *, block_b=None):
    """x: [B, T, D]; atten_w: [T, D, 1]; atten_bias: [T, 1, 1].  Returns [B, D]."""
    B, T, D = x.shape
    w = atten_w.reshape(T, D).astype(jnp.float32)          # squeeze trailing singleton
    b = atten_bias.reshape(1, T).astype(jnp.float32)

    tb = _pick_block_b(B, T, D) if block_b is None else int(block_b)
    if tb >= B:
        tb = B                                  # single block == full extent
    else:
        tb = max(8, (tb // 8) * 8)              # (TB, D) out block needs TB % 8 == 0
    grid = (pl.cdiv(B, tb),)                    # partial last block is masked by Pallas

    return pl.pallas_call(
        self_attention_kernel,
        out_shape=jax.ShapeDtypeStruct((B, D), x.dtype),
        grid=grid,
        in_specs=[
            pl.BlockSpec((tb, T, D), lambda i: (i, 0, 0)),   # x: pipelined over batch
            pl.BlockSpec((T, D), lambda i: (0, 0)),          # atten_w: resident
            pl.BlockSpec((1, T), lambda i: (0, 0)),          # atten_bias: resident
        ],
        out_specs=pl.BlockSpec((tb, D), lambda i: (i, 0)),
        compiler_params=pltpu.CompilerParams(
            dimension_semantics=("parallel",),               # 2-TC sharding on v7x
        ),
    )(x, w, b)


def ref_forward(x, atten_w, atten_bias):
    """Pure-JAX reference mirroring the PyTorch module exactly."""
    T, D, _ = atten_w.shape
    w = atten_w.reshape(T, D)
    b = atten_bias.reshape(T)
    score = jnp.tanh(jnp.einsum("btd,td->bt", x, w) + b[None, :])   # [B, T]
    return jnp.einsum("bt,btd->bd", score, x)                       # [B, D]


if __name__ == "__main__":
    key = jax.random.PRNGKey(0)
    T, D = 8, 32                      # window_size (seq_len), input_size (hidden)

    k_x, k_w, k_x2 = jax.random.split(key, 3)
    # Glorot init exactly as in the module: uniform(-stdv, stdv), stdv = sqrt(6/(D+1)).
    stdv = math.sqrt(6.0 / (D + 1))
    atten_w = jax.random.uniform(
        k_w, (T, D, 1), jnp.float32, minval=-stdv, maxval=stdv)
    atten_bias = jnp.zeros((T, 1, 1), jnp.float32)   # .fill_(0) in the module

    # Case 1: module-nominal tiny batch (single block, grid of 1).
    x = jax.random.normal(k_x, (2, T, D), jnp.float32)
    out = jax.block_until_ready(self_attention_forward(x, atten_w, atten_bias))
    ref = jax.block_until_ready(ref_forward(x, atten_w, atten_bias))
    assert out.shape == (2, D), out.shape
    assert jnp.allclose(out, ref, atol=1e-5, rtol=1e-5)

    # Case 2: larger batch with a forced small block to exercise the pipelined
    # multi-block grid, including a masked partial final block (40 = 2*16 + 8).
    x2 = jax.random.normal(k_x2, (40, T, D), jnp.float32)
    out2 = jax.block_until_ready(
        self_attention_forward(x2, atten_w, atten_bias, block_b=16))
    ref2 = jax.block_until_ready(ref_forward(x2, atten_w, atten_bias))
    assert out2.shape == (40, D), out2.shape
    assert jnp.allclose(out2, ref2, atol=1e-5, rtol=1e-5)

    print("KERNEL_OK")
</pallas_src>

<mosaic_0001>
module attributes {stable_mosaic.version = 11 : i64} {
  func.func @self_attention_kernel(%arg0: i32, %arg1: memref<2x8x32xf32, #tpu.memory_space<vmem>>, %arg2: memref<8x32xf32, #tpu.memory_space<vmem>>, %arg3: memref<1x8xf32, #tpu.memory_space<vmem>>, %arg4: memref<2x32xf32, #tpu.memory_space<vmem>>) attributes {dimension_semantics = [#tpu.dimension_semantics<parallel>], iteration_bounds = array<i64: 1>, scalar_prefetch = 0 : i64, scratch_operands = 0 : i64, tpu.core_type = #tpu.core_type<tc>, window_params = [{transform_indices = @transform_0, window_bounds = array<i64: 2, 8, 32>}, {pipeline_mode = #tpu.pipeline_mode<synchronous>, transform_indices = @transform_1, window_bounds = array<i64: 8, 32>}, {pipeline_mode = #tpu.pipeline_mode<synchronous>, transform_indices = @transform_2, window_bounds = array<i64: 1, 8>}, {transform_indices = @transform_3, window_bounds = array<i64: 2, 32>}]} {
    %c0 = arith.constant 0 : index
    %c0_0 = arith.constant 0 : index
    %c0_1 = arith.constant 0 : index
    %0 = vector.load %arg1[%c0, %c0_0, %c0_1] : memref<2x8x32xf32, #tpu.memory_space<vmem>>, vector<2x8x32xf32>
    %c0_2 = arith.constant 0 : index
    %c0_3 = arith.constant 0 : index
    %1 = vector.load %arg2[%c0_2, %c0_3] : memref<8x32xf32, #tpu.memory_space<vmem>>, vector<8x32xf32>
    %c0_4 = arith.constant 0 : index
    %c0_5 = arith.constant 0 : index
    %2 = vector.load %arg3[%c0_4, %c0_5] : memref<1x8xf32, #tpu.memory_space<vmem>>, vector<1x8xf32>
    %3 = vector.shape_cast %1 : vector<8x32xf32> to vector<1x8x32xf32>
    %4 = vector.broadcast %3 : vector<1x8x32xf32> to vector<2x8x32xf32>
    %5 = arith.mulf %0, %4 : vector<2x8x32xf32>
    %cst = arith.constant dense<0.000000e+00> : vector<2x8xf32>
    %6 = vector.multi_reduction <add>, %5, %cst [2] : vector<2x8x32xf32> to vector<2x8xf32>
    %7 = vector.broadcast %2 : vector<1x8xf32> to vector<2x8xf32>
    %8 = arith.addf %6, %7 : vector<2x8xf32>
    %9 = math.tanh %8 : vector<2x8xf32>
    %10 = vector.shape_cast %9 : vector<2x8xf32> to vector<2x8x1xf32>
    %11 = vector.broadcast %10 : vector<2x8x1xf32> to vector<2x8x32xf32>
    %12 = arith.mulf %11, %0 : vector<2x8x32xf32>
    %cst_6 = arith.constant dense<0.000000e+00> : vector<2x32xf32>
    %13 = vector.multi_reduction <add>, %12, %cst_6 [1] : vector<2x8x32xf32> to vector<2x32xf32>
    %c0_7 = arith.constant 0 : index
    %c0_8 = arith.constant 0 : index
    %14 = vector.load %arg4[%c0_7, %c0_8] : memref<2x32xf32, #tpu.memory_space<vmem>>, vector<2x32xf32>
    tpu.vector_store %arg4[%c0_7, %c0_8], %13 {strides = array<i32>} : memref<2x32xf32, #tpu.memory_space<vmem>>, vector<2x32xf32>,
    return
  }
  func.func @transform_0(%arg0: i32) -> (i32, i32, i32) {
    %c0_i32 = arith.constant 0 : i32
    %c0_i32_0 = arith.constant 0 : i32
    %c0_i32_1 = arith.constant 0 : i32
    return %arg0, %c0_i32, %c0_i32_0 : i32, i32, i32
  }
  func.func @transform_1(%arg0: i32) -> (i32, i32) {
    %c0_i32 = arith.constant 0 : i32
    %c0_i32_0 = arith.constant 0 : i32
    %c0_i32_1 = arith.constant 0 : i32
    return %c0_i32, %c0_i32_0 : i32, i32
  }
  func.func @transform_2(%arg0: i32) -> (i32, i32) {
    %c0_i32 = arith.constant 0 : i32
    %c0_i32_0 = arith.constant 0 : i32
    %c0_i32_1 = arith.constant 0 : i32
    return %c0_i32, %c0_i32_0 : i32, i32
  }
  func.func @transform_3(%arg0: i32) -> (i32, i32) {
    %c0_i32 = arith.constant 0 : i32
    %c0_i32_0 = arith.constant 0 : i32
    return %arg0, %c0_i32 : i32, i32
  }
}

</mosaic_0001>

<llo_original>
// kernel: self_attention_forward.1
$region0: #{self_attention_forward.1}
  #allocation0 [shape = 'u32[]', space=smem, size = 0x4, offset = 0x4, fixed_abs, tag = 'smem constant byte address 0x4 - core index']
  #allocation1 [shape = 'u32[72,128]{1,0:T(1,128)}', space=vmem, size = 0x9000, scoped, tag = 'internal scratch']
  %s0 = inlined_call_operand.hbm [shape: f32[2,8,32], index: 0, kind: input, shape index: {}]
  %s1 = inlined_call_operand.hbm [shape: f32[8,32], index: 1, kind: input, shape index: {}]
  %s2 = inlined_call_operand.vmem [shape: f32[1,8], index: 2, kind: input, shape index: {}]
  %s3 = inlined_call_operand.hbm [shape: f32[2,32], index: 3, kind: output, shape index: {}]
  %s4 = sld [smem:[#allocation0]]
  $region30: #{self_attention_forward.1} parent=0
    _
  %s6 = ssub.s32 1, %s4
  %s7 = scalar_select 0, %s6, %s4
  $region1: #{self_attention_forward.1} parent=0
    #allocation2 [shape = 'u8[8192]{0}', space=vmem, size = 0x2000, scoped, tag = 'input window, operand 0, single buffered']
    #allocation3 [shape = 's32[1]{0}', space=sflag, size = 0x4, scoped, tag = 'scoped memory for self_attention_forward.1']
    #allocation4 [shape = 's32[1]{0}', space=sflag, size = 0x4, scoped, tag = 'scoped memory for self_attention_forward.1']
    #allocation5 [shape = 'u8[4096]{0}', space=vmem, size = 0x1000, scoped, tag = 'input window, operand 1, single buffered']
    #allocation6 [shape = 's32[1]{0}', space=sflag, size = 0x4, scoped, tag = 'scoped memory for self_attention_forward.1']
    #allocation7 [shape = 'u8[1024]{0}', space=vmem, size = 0x400, scoped, tag = 'output window, operand 0, single buffered']
    %8 = vsyncpa [#allocation3], 0
    %9 = vsyncpa [#allocation6], 0
    %10 = vsyncpa [#allocation4], 0
    // Predicated region
    $region2: #{self_attention_forward.1} parent=1 // pred_check
      _
    $region3: #{self_attention_forward.1} parent=1 // pred_check_branch
      %12 = sbr.rel (0) target = $region5
    $region4: #{self_attention_forward.1} parent=1 // pred_region
      %14 = vsyncadd [#allocation3], 0
      %s15 = sshll.u32 %s0, 4
      %s16 = int_to_ptr.hbm [resolvable:$true] %s15
      %s17 = sshll.u32 [#allocation2], 4
      %s18 = int_to_ptr.vmem [resolvable:$true] %s17
      %23 = dma.hbm_to_vmem [thread:$0]  %s16, 256, %s18, [#allocation3], 128, 128, 8
    $region5: #{self_attention_forward.1} parent=1 // pred_fallthru
      _
    // Predicated region
    $region6: #{self_attention_forward.1} parent=1 // pred_check
      _
    $region7: #{self_attention_forward.1} parent=1 // pred_check_branch
      %25 = sbr.rel (0) target = $region9
    $region8: #{self_attention_forward.1} parent=1 // pred_region
      %27 = vsyncadd [#allocation6], 0
      %s29 = sshll.u32 %s1, 4
      %s30 = int_to_ptr.hbm [resolvable:$true] %s29
      %s31 = sshll.u32 [#allocation5], 4
      %s32 = int_to_ptr.vmem [resolvable:$true] %s31
      %34 = dma.hbm_to_vmem [thread:$0]  %s30, 128, %s32, [#allocation6]
    $region9: #{self_attention_forward.1} parent=1 // pred_fallthru
      _
    // Predicated region
    $region10: #{self_attention_forward.1} parent=1 // pred_check
      _
    $region11: #{self_attention_forward.1} parent=1 // pred_check_branch
      %36 = sbr.rel (0) target = $region13
    $region12: #{self_attention_forward.1} parent=1 // pred_region
      _
    $region13: #{self_attention_forward.1} parent=1 // pred_fallthru
      _
    // Predicated region
    $region14: #{self_attention_forward.1} parent=1 // pred_check
      _
    $region15: #{self_attention_forward.1} parent=1 // pred_check_branch
      %38 = sbr.rel (0) target = $region17
    $region16: #{self_attention_forward.1} parent=1 // pred_region
      %40 = dma.done [#allocation3], 256
    $region17: #{self_attention_forward.1} parent=1 // pred_fallthru
      _
    // Predicated region
    $region18: #{self_attention_forward.1} parent=1 // pred_check
      _
    $region19: #{self_attention_forward.1} parent=1 // pred_check_branch
      %42 = sbr.rel (0) target = $region21
    $region20: #{self_attention_forward.1} parent=1 // pred_region
      %44 = dma.done [#allocation6], 128
    $region21: #{self_attention_forward.1} parent=1 // pred_fallthru
      _
    %v45 = vld [vmem:[#allocation2] sm:$0xff]
    %v46 = vld [vmem:[#allocation2 + $0x8] sm:$0xff]
    %v47 = vld [vmem:[#allocation5] sm:$0xff]
    %v48 = vld [vmem:[%s2] sm:$0x1]
    %v49 = vmul.f32 %v45, %v47
    %v50 = vmul.f32 %v46, %v47
    %vm51 = vcmask 261120
    %v52 = vsel %vm51, %v49, 0.0
    %53 = vadd.xlane.f32.xlu0 %v52
    %v54 = vpop.xlane.xlu0 %53
    %v55 = vsel %vm51, %v50, 0.0
    %56 = vadd.xlane.f32.xlu0 %v55
    %v57 = vpop.xlane.xlu0 %56
    %v59 = vperm.slane %v48, 0
    %v60 = vlaneseq
    %v61 = vshrl.u32 %v60, 7
    %63 = vset.pattern.permute.xlu0 %v61
    %64 = vperm.xlu0 %63, %v59
    %v65 = vpop.permute.xlu0 %64
    %v67 = vadd.f32 %v54, %v65
    %v68 = vadd.f32 %v57, %v65
    %v69 = vtanh.pop %v67
    %v70 = vtanh.pop %v68
    %72 = vset.pattern.permute.xlu0 0
    %73 = vperm.xlu0 %72, %v69
    %v74 = vpop.permute.xlu0 %73
    %77 = vset.pattern.permute.xlu0 0
    %78 = vperm.xlu0 %77, %v70
    %v79 = vpop.permute.xlu0 %78
    %v81 = vmul.f32 %v74, %v45
    %v82 = vmul.f32 %v79, %v46
    %v83 = vsel %vm51, %v81, 0.0
    %v84 = vrot.slane %v83, 4
    %v85 = vadd.f32 %v83, %v84
    %v86 = vrot.slane %v85, 2
    %v87 = vadd.f32 %v85, %v86
    %v88 = vrot.slane %v87, 1
    %v89 = vadd.f32 %v87, %v88
    %v90 = vsel %vm51, %v82, 0.0
    %v91 = vrot.slane %v90, 4
    %v92 = vadd.f32 %v90, %v91
    %v93 = vrot.slane %v92, 2
    %v94 = vadd.f32 %v92, %v93
    %v95 = vrot.slane %v94, 1
    %v96 = vadd.f32 %v94, %v95
    %vm99 = vcmask 1041409
    %v100 = vsel %vm99, %v96, %v89
    %vm102 = vcmask 254976
    %103 = vst.msk [vmem:[#allocation7] sm:$0x3] %vm102, %v100
    // Predicated region
    $region22: #{self_attention_forward.1} parent=1 // pred_check
      _
    $region23: #{self_attention_forward.1} parent=1 // pred_check_branch
      %105 = sbr.rel (0) target = $region25
    $region24: #{self_attention_forward.1} parent=1 // pred_region
      %107 = vsyncadd [#allocation4], 0
      %s109 = sshll.u32 [#allocation7], 4
      %s110 = int_to_ptr.vmem [resolvable:$true] %s109
      %s111 = sshll.u32 %s3, 4
      %s112 = int_to_ptr.hbm [resolvable:$true] %s111
      %114 = dma.vmem_to_hbm [thread:$0]  %s110, 32, %s112, [#allocation4]
    $region25: #{self_attention_forward.1} parent=1 // pred_fallthru
      _
    // Predicated region
    $region26: #{self_attention_forward.1} parent=1 // pred_check
      _
    $region27: #{self_attention_forward.1} parent=1 // pred_check_branch
      %116 = sbr.rel (0) target = $region29
    $region28: #{self_attention_forward.1} parent=1 // pred_region
      %118 = dma.done [#allocation4], 32
    $region29: #{self_attention_forward.1} parent=1 // pred_fallthru
      _
    %119 = vsyncpa [#allocation3], 1
    %120 = vsyncpa [#allocation6], 1
    %121 = vsyncpa [#allocation4], 1

</llo_original>
